<compile_context>
chip_gen: v7x
topology: tpu7x:2x2x1
jax: 0.10.0
libtpu: 0.0.40
codegen_flags: <defaults>
</compile_context>

<pallas_src>
import jax
import jax.numpy as jnp
from jax.experimental import pallas as pl
from jax.experimental.pallas import tpu as pltpu


def _unet_block_kernel(x_ref, wb1_ref, b1_ref, wb2_ref, b2_ref, out_ref):
    """One grid step = B images; all rows stacked, everything lane-dense.

    x_ref:   (B, H, W*Cin)       input images, channels innermost (lane axis)
    wb1_ref: (3, W*Cin, W*Cout)  conv1 banded weight slabs, one per dy shift
    b1_ref:  (1, W*Cout)         conv1 bias tiled across W
    wb2_ref: (3, W*Cout, W*Cout) conv2 banded weight slabs
    b2_ref:  (1, W*Cout)         conv2 bias tiled across W
    out_ref: (B, H, W*Cout)      lane-dense output (full 128-lane stores)
    """
    B, H, wcin = x_ref.shape
    wcout = out_ref.shape[2]
    R = B * H

    # Per-image boundary masks for the +/-1 row shifts.  Images are stacked
    # along the row axis, so the roll wraps between images; zero those rows
    # (this is exactly the 'same'-conv zero padding along H).
    row = jax.lax.broadcasted_iota(jnp.int32, (R, 1), 0)
    top = (row % H) == 0          # first row of each image: nothing above
    bot = (row % H) == (H - 1)    # last row of each image: nothing below

    def conv3x3_relu(a2, wb_ref, b_ref):
        # a2: (R, K) f32 activations.  dy row shifts via XLU roll + VPU select;
        # the W-direction taps/padding are baked into the banded weight slabs.
        up = jnp.where(top, 0.0, pltpu.roll(a2, shift=1, axis=0))      # row r-1
        dn = jnp.where(bot, 0.0, pltpu.roll(a2, shift=R - 1, axis=0))  # row r+1
        cdt = wb_ref.dtype
        y = jnp.dot(up.astype(cdt), wb_ref[0], preferred_element_type=jnp.float32)
        y += jnp.dot(a2.astype(cdt), wb_ref[1], preferred_element_type=jnp.float32)
        y += jnp.dot(dn.astype(cdt), wb_ref[2], preferred_element_type=jnp.float32)
        return jnp.maximum(y + b_ref[...], 0.0)         # bias + ReLU in f32

    x2 = x_ref[...].reshape(R, wcin)                     # (B*H, W*Cin)
    y1 = conv3x3_relu(x2, wb1_ref, b1_ref)               # (B*H, W*Cout) in vregs
    y2 = conv3x3_relu(y1, wb2_ref, b2_ref)               # (B*H, W*Cout)
    out_ref[...] = y2.reshape(B, H, wcout).astype(out_ref.dtype)


def _band_weight(w_hwio, W):
    """Expand a (3, 3, Cin, Cout) HWIO kernel into three banded slabs stacked as
    (3, W*Cin, W*Cout):
        B[dy, w_in*Cin + ci, w_out*Cout + co]
            = w[dy, w_in - w_out + 1, ci, co]   if |w_in - w_out| <= 1
            = 0                                 otherwise
    (the zeros implement the 'same' zero padding along W)."""
    _, _, cin, cout = w_hwio.shape
    w_in = jnp.arange(W)[:, None]
    w_out = jnp.arange(W)[None, :]
    dx = w_in - w_out + 1                                     # (W, W)
    valid = (dx >= 0) & (dx <= 2)
    g = w_hwio[:, jnp.clip(dx, 0, 2), :, :]                   # (3, W, W, Cin, Cout)
    g = jnp.where(valid[None, :, :, None, None], g, 0.0)
    g = jnp.transpose(g, (0, 1, 3, 2, 4))                     # (dy, w_in, ci, w_out, co)
    return g.reshape(3, W * cin, W * cout)


def _pick_batch_block(N, H, target_rows=256):
    """Largest divisor B of N with B*H <= target_rows: fills the MXU M dim
    (256 on v6e/v7x; ~128 already saturates v5e's 128x128 MXU) and amortizes
    the per-grid-step overhead."""
    best = 1
    for b in range(1, N + 1):
        if N % b == 0 and b * H <= target_rows:
            best = b
    return best


def unet_block_forward(x_nchw, w1, b1, w2, b2, *, weight_dtype=jnp.float32,
                       batch_block=None):
    """x_nchw: (N, Cin, H, W); w*: (Cout, Cin, 3, 3) [PyTorch OIHW]; b*: (Cout,).

    weight_dtype=jnp.bfloat16 halves weight HBM traffic and uses the native
    bf16 MXU rate (f32 accumulation is kept); jnp.float32 matches the PyTorch
    fp32 module closely.
    """
    N, Cin, H, W = x_nchw.shape
    Cout = w1.shape[0]
    B = _pick_batch_block(N, H) if batch_block is None else batch_block
    assert N % B == 0, (N, B)

    # NHWC, then fold W and C into one lane-dense axis (free relabeling in HBM).
    x = jnp.transpose(x_nchw, (0, 2, 3, 1)).astype(jnp.float32).reshape(N, H, W * Cin)

    w1h = jnp.transpose(w1, (2, 3, 1, 0)).astype(jnp.float32)     # (3,3,Cin,Cout)
    w2h = jnp.transpose(w2, (2, 3, 1, 0)).astype(jnp.float32)     # (3,3,Cout,Cout)
    wb1 = _band_weight(w1h, W).astype(weight_dtype)               # (3, W*Cin,  W*Cout)
    wb2 = _band_weight(w2h, W).astype(weight_dtype)               # (3, W*Cout, W*Cout)
    b1l = jnp.tile(b1.astype(jnp.float32), W).reshape(1, W * Cout)
    b2l = jnp.tile(b2.astype(jnp.float32), W).reshape(1, W * Cout)

    # Executed (banded) matmul flops -- ~W/3x the true conv flops; advisory only.
    flops = 2 * 3 * N * H * W * W * (Cin * Cout + Cout * Cout)
    bytes_accessed = (x.size * x.dtype.itemsize
                      + wb1.size * wb1.dtype.itemsize
                      + wb2.size * wb2.dtype.itemsize
                      + b1l.size * 4 + b2l.size * 4
                      + N * H * W * Cout * 4)

    out = pl.pallas_call(
        _unet_block_kernel,
        out_shape=jax.ShapeDtypeStruct((N, H, W * Cout), jnp.float32),
        grid_spec=pltpu.PrefetchScalarGridSpec(
            num_scalar_prefetch=0,
            grid=(N // B,),
            in_specs=[
                pl.BlockSpec((B, H, W * Cin), lambda n: (n, 0, 0)),
                # Grid-invariant blocks: the pipeline DMAs them exactly once.
                pl.BlockSpec((3, W * Cin, W * Cout), lambda n: (0, 0, 0)),
                pl.BlockSpec((1, W * Cout), lambda n: (0, 0)),
                pl.BlockSpec((3, W * Cout, W * Cout), lambda n: (0, 0, 0)),
                pl.BlockSpec((1, W * Cout), lambda n: (0, 0)),
            ],
            out_specs=pl.BlockSpec((B, H, W * Cout), lambda n: (n, 0, 0)),
        ),
        compiler_params=pltpu.CompilerParams(
            dimension_semantics=("parallel",)),
        cost_estimate=pl.CostEstimate(
            flops=flops, transcendentals=0, bytes_accessed=bytes_accessed),
    )(x, wb1, b1l, wb2, b2l)

    out = out.reshape(N, H, W, Cout)
    return jnp.transpose(out, (0, 3, 1, 2))                       # back to NCHW


def _reference_block(x, w1, b1, w2, b2):
    """Pure-JAX reference matching torch semantics (NCHW, OIHW, pad=1)."""
    dn = ("NCHW", "OIHW", "NCHW")
    y = jax.lax.conv_general_dilated(x, w1, (1, 1), ((1, 1), (1, 1)),
                                     dimension_numbers=dn)
    y = jax.nn.relu(y + b1[None, :, None, None])
    y = jax.lax.conv_general_dilated(y, w2, (1, 1), ((1, 1), (1, 1)),
                                     dimension_numbers=dn)
    return jax.nn.relu(y + b2[None, :, None, None])


if __name__ == "__main__":
    # Small, deterministic shapes: Block(in_ch=4, out_ch=8) on a (2, 4, 16, 16) input.
    N, Cin, Cout, H, W = 2, 4, 8, 16, 16
    key = jax.random.PRNGKey(0)
    kx, kw1, kb1, kw2, kb2 = jax.random.split(key, 5)

    x = jax.random.normal(kx, (N, Cin, H, W), dtype=jnp.float32)
    w1 = 0.1 * jax.random.normal(kw1, (Cout, Cin, 3, 3), dtype=jnp.float32)
    b1 = 0.1 * jax.random.normal(kb1, (Cout,), dtype=jnp.float32)
    w2 = 0.1 * jax.random.normal(kw2, (Cout, Cout, 3, 3), dtype=jnp.float32)
    b2 = 0.1 * jax.random.normal(kb2, (Cout,), dtype=jnp.float32)

    ref = jax.block_until_ready(_reference_block(x, w1, b1, w2, b2))

    # f32 weights: bit-close match to the PyTorch fp32 module.
    out = jax.block_until_ready(unet_block_forward(x, w1, b1, w2, b2))
    assert out.shape == (N, Cout, H, W), out.shape
    assert jnp.allclose(out, ref, atol=1e-4, rtol=1e-4), \
        f"f32 max abs diff = {jnp.max(jnp.abs(out - ref))}"

    # bf16 weights (f32 accumulate): halves weight HBM traffic, native MXU rate.
    out_bf16 = jax.block_until_ready(
        unet_block_forward(x, w1, b1, w2, b2, weight_dtype=jnp.bfloat16))
    assert jnp.allclose(out_bf16, ref, atol=5e-2, rtol=5e-2), \
        f"bf16 max abs diff = {jnp.max(jnp.abs(out_bf16 - ref))}"

    print("KERNEL_OK")
</pallas_src>

<mosaic_0001>
module attributes {stable_mosaic.version = 11 : i64} {
  func.func @_unet_block_kernel(%arg0: i32, %arg1: memref<2x16x64xf32, #tpu.memory_space<vmem>>, %arg2: memref<3x64x128xf32, #tpu.memory_space<vmem>>, %arg3: memref<1x128xf32, #tpu.memory_space<vmem>>, %arg4: memref<3x128x128xf32, #tpu.memory_space<vmem>>, %arg5: memref<1x128xf32, #tpu.memory_space<vmem>>, %arg6: memref<2x16x128xf32, #tpu.memory_space<vmem>>) attributes {dimension_semantics = [#tpu.dimension_semantics<parallel>], iteration_bounds = array<i64: 1>, scalar_prefetch = 0 : i64, scratch_operands = 0 : i64, tpu.core_type = #tpu.core_type<tc>, window_params = [{transform_indices = @transform_0, window_bounds = array<i64: 2, 16, 64>}, {pipeline_mode = #tpu.pipeline_mode<synchronous>, transform_indices = @transform_1, window_bounds = array<i64: 3, 64, 128>}, {pipeline_mode = #tpu.pipeline_mode<synchronous>, transform_indices = @transform_2, window_bounds = array<i64: 1, 128>}, {pipeline_mode = #tpu.pipeline_mode<synchronous>, transform_indices = @transform_3, window_bounds = array<i64: 3, 128, 128>}, {pipeline_mode = #tpu.pipeline_mode<synchronous>, transform_indices = @transform_4, window_bounds = array<i64: 1, 128>}, {transform_indices = @transform_5, window_bounds = array<i64: 2, 16, 128>}]} {
    %0 = tpu.iota {dimensions = array<i32: 0>} : vector<32x1xi32>
    %c16_i32 = arith.constant 16 : i32
    %c0_i32 = arith.constant 0 : i32
    %1 = arith.cmpi eq, %c16_i32, %c0_i32 : i32
    %c1_i32 = arith.constant 1 : i32
    %2 = arith.select %1, %c1_i32, %c16_i32 : i32
    %3 = vector.broadcast %2 : i32 to vector<32x1xi32>
    %4 = arith.remsi %0, %3 : vector<32x1xi32>
    %c0_i32_0 = arith.constant 0 : i32
    %5 = vector.broadcast %c0_i32_0 : i32 to vector<32x1xi32>
    %6 = arith.cmpi ne, %4, %5 : vector<32x1xi32>
    %c0_i32_1 = arith.constant 0 : i32
    %7 = vector.broadcast %c0_i32_1 : i32 to vector<32x1xi32>
    %8 = arith.cmpi slt, %4, %7 : vector<32x1xi32>
    %c0_i32_2 = arith.constant 0 : i32
    %9 = arith.cmpi slt, %2, %c0_i32_2 : i32
    %10 = vector.broadcast %9 : i1 to vector<32x1xi1>
    %11 = vector.broadcast %10 : vector<32x1xi1> to vector<32x1xi1>
    %12 = arith.xori %8, %11 : vector<32x1xi1>
    %13 = arith.andi %12, %6 : vector<32x1xi1>
    %14 = vector.broadcast %2 : i32 to vector<32x1xi32>
    %15 = arith.addi %4, %14 : vector<32x1xi32>
    %16 = arith.select %13, %15, %4 : vector<32x1xi1>, vector<32x1xi32>
    %c0_i32_3 = arith.constant 0 : i32
    %17 = vector.broadcast %c0_i32_3 : i32 to vector<32x1xi32>
    %18 = arith.cmpi eq, %16, %17 : vector<32x1xi32>
    %c16_i32_4 = arith.constant 16 : i32
    %c0_i32_5 = arith.constant 0 : i32
    %19 = arith.cmpi eq, %c16_i32_4, %c0_i32_5 : i32
    %c1_i32_6 = arith.constant 1 : i32
    %20 = arith.select %19, %c1_i32_6, %c16_i32_4 : i32
    %21 = vector.broadcast %20 : i32 to vector<32x1xi32>
    %22 = arith.remsi %0, %21 : vector<32x1xi32>
    %c0_i32_7 = arith.constant 0 : i32
    %23 = vector.broadcast %c0_i32_7 : i32 to vector<32x1xi32>
    %24 = arith.cmpi ne, %22, %23 : vector<32x1xi32>
    %c0_i32_8 = arith.constant 0 : i32
    %25 = vector.broadcast %c0_i32_8 : i32 to vector<32x1xi32>
    %26 = arith.cmpi slt, %22, %25 : vector<32x1xi32>
    %c0_i32_9 = arith.constant 0 : i32
    %27 = arith.cmpi slt, %20, %c0_i32_9 : i32
    %28 = vector.broadcast %27 : i1 to vector<32x1xi1>
    %29 = vector.broadcast %28 : vector<32x1xi1> to vector<32x1xi1>
    %30 = arith.xori %26, %29 : vector<32x1xi1>
    %31 = arith.andi %30, %24 : vector<32x1xi1>
    %32 = vector.broadcast %20 : i32 to vector<32x1xi32>
    %33 = arith.addi %22, %32 : vector<32x1xi32>
    %34 = arith.select %31, %33, %22 : vector<32x1xi1>, vector<32x1xi32>
    %c15_i32 = arith.constant 15 : i32
    %35 = vector.broadcast %c15_i32 : i32 to vector<32x1xi32>
    %36 = arith.cmpi eq, %34, %35 : vector<32x1xi32>
    %c0 = arith.constant 0 : index
    %c0_10 = arith.constant 0 : index
    %c0_11 = arith.constant 0 : index
    %37 = vector.load %arg1[%c0, %c0_10, %c0_11] : memref<2x16x64xf32, #tpu.memory_space<vmem>>, vector<2x16x64xf32>
    %38 = vector.shape_cast %37 : vector<2x16x64xf32> to vector<32x64xf32>
    %c1_i32_12 = arith.constant 1 : i32
    %39 = tpu.dynamic_rotate %38 by %c1_i32_12 dim 0 : vector<32x64xf32>, i32 -> vector<32x64xf32>
    %cst = arith.constant 0.000000e+00 : f32
    %40 = vector.shape_cast %18 : vector<32x1xi1> to vector<32x1xi1>
    %41 = vector.broadcast %40 : vector<32x1xi1> to vector<32x64xi1>
    %42 = vector.broadcast %cst : f32 to vector<32x64xf32>
    %43 = arith.select %41, %42, %39 : vector<32x64xi1>, vector<32x64xf32>
    %c31_i32 = arith.constant 31 : i32
    %44 = tpu.dynamic_rotate %38 by %c31_i32 dim 0 : vector<32x64xf32>, i32 -> vector<32x64xf32>
    %cst_13 = arith.constant 0.000000e+00 : f32
    %45 = vector.shape_cast %36 : vector<32x1xi1> to vector<32x1xi1>
    %46 = vector.broadcast %45 : vector<32x1xi1> to vector<32x64xi1>
    %47 = vector.broadcast %cst_13 : f32 to vector<32x64xf32>
    %48 = arith.select %46, %47, %44 : vector<32x64xi1>, vector<32x64xf32>
    %c0_14 = arith.constant 0 : index
    %c0_15 = arith.constant 0 : index
    %c0_16 = arith.constant 0 : index
    %49 = vector.load %arg2[%c0_14, %c0_15, %c0_16] : memref<3x64x128xf32, #tpu.memory_space<vmem>>, vector<1x64x128xf32>
    %50 = vector.shape_cast %49 : vector<1x64x128xf32> to vector<64x128xf32>
    %cst_17 = arith.constant dense<0.000000e+00> : vector<32x128xf32>
    %51 = tpu.matmul %43, %50, %cst_17 {dimension_numbers = #tpu.dot_dimension_numbers<[1], [0], [0], [1], [0, 0, 1, 1], [], []>} : vector<32x64xf32>, vector<64x128xf32>, vector<32x128xf32> -> vector<32x128xf32>
    %c1 = arith.constant 1 : index
    %c0_18 = arith.constant 0 : index
    %c0_19 = arith.constant 0 : index
    %52 = vector.load %arg2[%c1, %c0_18, %c0_19] : memref<3x64x128xf32, #tpu.memory_space<vmem>>, vector<1x64x128xf32>
    %53 = vector.shape_cast %52 : vector<1x64x128xf32> to vector<64x128xf32>
    %cst_20 = arith.constant dense<0.000000e+00> : vector<32x128xf32>
    %54 = tpu.matmul %38, %53, %cst_20 {dimension_numbers = #tpu.dot_dimension_numbers<[1], [0], [0], [1], [0, 0, 1, 1], [], []>} : vector<32x64xf32>, vector<64x128xf32>, vector<32x128xf32> -> vector<32x128xf32>
    %55 = arith.addf %51, %54 : vector<32x128xf32>
    %c2 = arith.constant 2 : index
    %c0_21 = arith.constant 0 : index
    %c0_22 = arith.constant 0 : index
    %56 = vector.load %arg2[%c2, %c0_21, %c0_22] : memref<3x64x128xf32, #tpu.memory_space<vmem>>, vector<1x64x128xf32>
    %57 = vector.shape_cast %56 : vector<1x64x128xf32> to vector<64x128xf32>
    %cst_23 = arith.constant dense<0.000000e+00> : vector<32x128xf32>
    %58 = tpu.matmul %48, %57, %cst_23 {dimension_numbers = #tpu.dot_dimension_numbers<[1], [0], [0], [1], [0, 0, 1, 1], [], []>} : vector<32x64xf32>, vector<64x128xf32>, vector<32x128xf32> -> vector<32x128xf32>
    %59 = arith.addf %55, %58 : vector<32x128xf32>
    %c0_24 = arith.constant 0 : index
    %c0_25 = arith.constant 0 : index
    %60 = vector.load %arg3[%c0_24, %c0_25] : memref<1x128xf32, #tpu.memory_space<vmem>>, vector<1x128xf32>
    %61 = vector.broadcast %60 : vector<1x128xf32> to vector<32x128xf32>
    %62 = arith.addf %59, %61 : vector<32x128xf32>
    %cst_26 = arith.constant 0.000000e+00 : f32
    %63 = vector.broadcast %cst_26 : f32 to vector<32x128xf32>
    %64 = arith.maximumf %62, %63 : vector<32x128xf32>
    %c1_i32_27 = arith.constant 1 : i32
    %65 = tpu.dynamic_rotate %64 by %c1_i32_27 dim 0 : vector<32x128xf32>, i32 -> vector<32x128xf32>
    %cst_28 = arith.constant 0.000000e+00 : f32
    %66 = vector.shape_cast %18 : vector<32x1xi1> to vector<32x1xi1>
    %67 = vector.broadcast %66 : vector<32x1xi1> to vector<32x128xi1>
    %68 = vector.broadcast %cst_28 : f32 to vector<32x128xf32>
    %69 = arith.select %67, %68, %65 : vector<32x128xi1>, vector<32x128xf32>
    %c31_i32_29 = arith.constant 31 : i32
    %70 = tpu.dynamic_rotate %64 by %c31_i32_29 dim 0 : vector<32x128xf32>, i32 -> vector<32x128xf32>
    %cst_30 = arith.constant 0.000000e+00 : f32
    %71 = vector.shape_cast %36 : vector<32x1xi1> to vector<32x1xi1>
    %72 = vector.broadcast %71 : vector<32x1xi1> to vector<32x128xi1>
    %73 = vector.broadcast %cst_30 : f32 to vector<32x128xf32>
    %74 = arith.select %72, %73, %70 : vector<32x128xi1>, vector<32x128xf32>
    %c0_31 = arith.constant 0 : index
    %c0_32 = arith.constant 0 : index
    %c0_33 = arith.constant 0 : index
    %75 = vector.load %arg4[%c0_31, %c0_32, %c0_33] : memref<3x128x128xf32, #tpu.memory_space<vmem>>, vector<1x128x128xf32>
    %76 = vector.shape_cast %75 : vector<1x128x128xf32> to vector<128x128xf32>
    %cst_34 = arith.constant dense<0.000000e+00> : vector<32x128xf32>
    %77 = tpu.matmul %69, %76, %cst_34 {dimension_numbers = #tpu.dot_dimension_numbers<[1], [0], [0], [1], [0, 0, 1, 1], [], []>} : vector<32x128xf32>, vector<128x128xf32>, vector<32x128xf32> -> vector<32x128xf32>
    %c1_35 = arith.constant 1 : index
    %c0_36 = arith.constant 0 : index
    %c0_37 = arith.constant 0 : index
    %78 = vector.load %arg4[%c1_35, %c0_36, %c0_37] : memref<3x128x128xf32, #tpu.memory_space<vmem>>, vector<1x128x128xf32>
    %79 = vector.shape_cast %78 : vector<1x128x128xf32> to vector<128x128xf32>
    %cst_38 = arith.constant dense<0.000000e+00> : vector<32x128xf32>
    %80 = tpu.matmul %64, %79, %cst_38 {dimension_numbers = #tpu.dot_dimension_numbers<[1], [0], [0], [1], [0, 0, 1, 1], [], []>} : vector<32x128xf32>, vector<128x128xf32>, vector<32x128xf32> -> vector<32x128xf32>
    %81 = arith.addf %77, %80 : vector<32x128xf32>
    %c2_39 = arith.constant 2 : index
    %c0_40 = arith.constant 0 : index
    %c0_41 = arith.constant 0 : index
    %82 = vector.load %arg4[%c2_39, %c0_40, %c0_41] : memref<3x128x128xf32, #tpu.memory_space<vmem>>, vector<1x128x128xf32>
    %83 = vector.shape_cast %82 : vector<1x128x128xf32> to vector<128x128xf32>
    %cst_42 = arith.constant dense<0.000000e+00> : vector<32x128xf32>
    %84 = tpu.matmul %74, %83, %cst_42 {dimension_numbers = #tpu.dot_dimension_numbers<[1], [0], [0], [1], [0, 0, 1, 1], [], []>} : vector<32x128xf32>, vector<128x128xf32>, vector<32x128xf32> -> vector<32x128xf32>
    %85 = arith.addf %81, %84 : vector<32x128xf32>
    %c0_43 = arith.constant 0 : index
    %c0_44 = arith.constant 0 : index
    %86 = vector.load %arg5[%c0_43, %c0_44] : memref<1x128xf32, #tpu.memory_space<vmem>>, vector<1x128xf32>
    %87 = vector.broadcast %86 : vector<1x128xf32> to vector<32x128xf32>
    %88 = arith.addf %85, %87 : vector<32x128xf32>
    %cst_45 = arith.constant 0.000000e+00 : f32
    %89 = vector.broadcast %cst_45 : f32 to vector<32x128xf32>
    %90 = arith.maximumf %88, %89 : vector<32x128xf32>
    %91 = vector.shape_cast %90 : vector<32x128xf32> to vector<2x16x128xf32>
    %c0_46 = arith.constant 0 : index
    %c0_47 = arith.constant 0 : index
    %c0_48 = arith.constant 0 : index
    %92 = vector.load %arg6[%c0_46, %c0_47, %c0_48] : memref<2x16x128xf32, #tpu.memory_space<vmem>>, vector<2x16x128xf32>
    tpu.vector_store %arg6[%c0_46, %c0_47, %c0_48], %91 {strides = array<i32>} : memref<2x16x128xf32, #tpu.memory_space<vmem>>, vector<2x16x128xf32>,
    return
  }
  func.func @transform_0(%arg0: i32) -> (i32, i32, i32) {
    %c0_i32 = arith.constant 0 : i32
    %c0_i32_0 = arith.constant 0 : i32
    %c0_i32_1 = arith.constant 0 : i32
    return %arg0, %c0_i32, %c0_i32_0 : i32, i32, i32
  }
  func.func @transform_1(%arg0: i32) -> (i32, i32, i32) {
    %c0_i32 = arith.constant 0 : i32
    %c0_i32_0 = arith.constant 0 : i32
    %c0_i32_1 = arith.constant 0 : i32
    %c0_i32_2 = arith.constant 0 : i32
    return %c0_i32, %c0_i32_0, %c0_i32_1 : i32, i32, i32
  }
  func.func @transform_2(%arg0: i32) -> (i32, i32) {
    %c0_i32 = arith.constant 0 : i32
    %c0_i32_0 = arith.constant 0 : i32
    %c0_i32_1 = arith.constant 0 : i32
    return %c0_i32, %c0_i32_0 : i32, i32
  }
  func.func @transform_3(%arg0: i32) -> (i32, i32, i32) {
    %c0_i32 = arith.constant 0 : i32
    %c0_i32_0 = arith.constant 0 : i32
    %c0_i32_1 = arith.constant 0 : i32
    %c0_i32_2 = arith.constant 0 : i32
    return %c0_i32, %c0_i32_0, %c0_i32_1 : i32, i32, i32
  }
  func.func @transform_4(%arg0: i32) -> (i32, i32) {
    %c0_i32 = arith.constant 0 : i32
    %c0_i32_0 = arith.constant 0 : i32
    %c0_i32_1 = arith.constant 0 : i32
    return %c0_i32, %c0_i32_0 : i32, i32
  }
  func.func @transform_5(%arg0: i32) -> (i32, i32, i32) {
    %c0_i32 = arith.constant 0 : i32
    %c0_i32_0 = arith.constant 0 : i32
    %c0_i32_1 = arith.constant 0 : i32
    return %arg0, %c0_i32, %c0_i32_0 : i32, i32, i32
  }
}

</mosaic_0001>

<llo_original>
// kernel: tpu_custom_call.1
$region0: #{tpu_custom_call.1}
  #allocation0 [shape = 'u32[]', space=smem, size = 0x4, offset = 0x4, fixed_abs, tag = 'smem constant byte address 0x4 - core index']
  #allocation1 [shape = 'u32[144,128]{1,0:T(1,128)}', space=vmem, size = 0x12000, scoped, tag = 'internal scratch']
  %s0 = inlined_call_operand.hbm [shape: f32[2,16,64], index: 0, kind: input, shape index: {}]
  %s1 = inlined_call_operand.hbm [shape: f32[3,64,128], index: 1, kind: input, shape index: {}]
  %s2 = inlined_call_operand.vmem [shape: f32[1,128], index: 2, kind: input, shape index: {}]
  %s3 = inlined_call_operand.hbm [shape: f32[3,128,128], index: 3, kind: input, shape index: {}]
  %s4 = inlined_call_operand.vmem [shape: f32[1,128], index: 4, kind: input, shape index: {}]
  %s5 = inlined_call_operand.hbm [shape: f32[2,16,128], index: 5, kind: output, shape index: {}]
  %s6 = sld [smem:[#allocation0]]
  $region42: #{tpu_custom_call.1} parent=0
    _
  %s8 = ssub.s32 1, %s6
  %s9 = scalar_select 0, %s8, %s6
  $region1: #{tpu_custom_call.1} parent=0
    #allocation2 [shape = 'u8[16384]{0}', space=vmem, size = 0x4000, scoped, tag = 'input window, operand 0, single buffered']
    #allocation3 [shape = 's32[1]{0}', space=sflag, size = 0x4, scoped, tag = 'scoped memory for tpu_custom_call.1']
    #allocation4 [shape = 's32[1]{0}', space=sflag, size = 0x4, scoped, tag = 'scoped memory for tpu_custom_call.1']
    #allocation5 [shape = 'u8[98304]{0}', space=vmem, size = 0x18000, scoped, tag = 'input window, operand 1, single buffered']
    #allocation6 [shape = 's32[1]{0}', space=sflag, size = 0x4, scoped, tag = 'scoped memory for tpu_custom_call.1']
    #allocation7 [shape = 'u8[196608]{0}', space=vmem, size = 0x30000, scoped, tag = 'input window, operand 3, single buffered']
    #allocation8 [shape = 'u8[16384]{0}', space=vmem, size = 0x4000, scoped, tag = 'output window, operand 0, single buffered']
    %10 = vsyncpa [#allocation3], 0
    %11 = vsyncpa [#allocation6], 0
    %12 = vsyncpa [#allocation4], 0
    // Predicated region
    $region2: #{tpu_custom_call.1} parent=1 // pred_check
      _
    $region3: #{tpu_custom_call.1} parent=1 // pred_check_branch
      %14 = sbr.rel (0) target = $region5
    $region4: #{tpu_custom_call.1} parent=1 // pred_region
      %s16 = ssub.s32 512, 512
      %17 = vsyncadd [#allocation3], %s16
      %s18 = sshll.u32 [#allocation2], 4
      %s19 = int_to_ptr.vmem [resolvable:$true] %s18
      %24 = dma.hbm_to_vmem [thread:$0]  %s0, 512, %s19, [#allocation3], 128, 128, 8
    $region5: #{tpu_custom_call.1} parent=1 // pred_fallthru
      _
    // Predicated region
    $region6: #{tpu_custom_call.1} parent=1 // pred_check
      _
    $region7: #{tpu_custom_call.1} parent=1 // pred_check_branch
      %26 = sbr.rel (0) target = $region9
    $region8: #{tpu_custom_call.1} parent=1 // pred_region
      %s28 = ssub.s32 3072, 3072
      %29 = vsyncadd [#allocation6], %s28
      %s30 = sshll.u32 [#allocation5], 4
      %s31 = int_to_ptr.vmem [resolvable:$true] %s30
      %36 = dma.hbm_to_vmem [thread:$0]  %s1, 3072, %s31, [#allocation6], 128, 128, 8
    $region9: #{tpu_custom_call.1} parent=1 // pred_fallthru
      _
    // Predicated region
    $region10: #{tpu_custom_call.1} parent=1 // pred_check
      _
    $region11: #{tpu_custom_call.1} parent=1 // pred_check_branch
      %38 = sbr.rel (0) target = $region13
    $region12: #{tpu_custom_call.1} parent=1 // pred_region
      _
    $region13: #{tpu_custom_call.1} parent=1 // pred_fallthru
      _
    // Predicated region
    $region14: #{tpu_custom_call.1} parent=1 // pred_check
      _
    $region15: #{tpu_custom_call.1} parent=1 // pred_check_branch
      %40 = sbr.rel (0) target = $region17
    $region16: #{tpu_custom_call.1} parent=1 // pred_region
      %s42 = ssub.s32 6144, 6144
      %43 = vsyncadd [#allocation6], %s42
      %s44 = sshll.u32 [#allocation7], 4
      %s45 = int_to_ptr.vmem [resolvable:$true] %s44
      %50 = dma.hbm_to_vmem [thread:$0]  %s3, 6144, %s45, [#allocation6], 128, 128, 8
    $region17: #{tpu_custom_call.1} parent=1 // pred_fallthru
      _
    // Predicated region
    $region18: #{tpu_custom_call.1} parent=1 // pred_check
      _
    $region19: #{tpu_custom_call.1} parent=1 // pred_check_branch
      %52 = sbr.rel (0) target = $region21
    $region20: #{tpu_custom_call.1} parent=1 // pred_region
      _
    $region21: #{tpu_custom_call.1} parent=1 // pred_fallthru
      _
    // Predicated region
    $region22: #{tpu_custom_call.1} parent=1 // pred_check
      _
    $region23: #{tpu_custom_call.1} parent=1 // pred_check_branch
      %54 = sbr.rel (0) target = $region25
    $region24: #{tpu_custom_call.1} parent=1 // pred_region
      %55 = dma.done [#allocation3], 512
    $region25: #{tpu_custom_call.1} parent=1 // pred_fallthru
      _
    // Predicated region
    $region26: #{tpu_custom_call.1} parent=1 // pred_check
      _
    $region27: #{tpu_custom_call.1} parent=1 // pred_check_branch
      %57 = sbr.rel (0) target = $region29
    $region28: #{tpu_custom_call.1} parent=1 // pred_region
      %58 = dma.done [#allocation6], 3072
    $region29: #{tpu_custom_call.1} parent=1 // pred_fallthru
      _
    // Predicated region
    $region30: #{tpu_custom_call.1} parent=1 // pred_check
      _
    $region31: #{tpu_custom_call.1} parent=1 // pred_check_branch
      %60 = sbr.rel (0) target = $region33
    $region32: #{tpu_custom_call.1} parent=1 // pred_region
      %61 = dma.done [#allocation6], 6144
    $region33: #{tpu_custom_call.1} parent=1 // pred_fallthru
      _
    %v62 = vlaneseq
    %v63 = vshrl.u32 %v62, 7
    %v64 = vadd.s32 %v63, 8
    %v65 = vadd.s32 %v63, 16
    %v66 = vadd.s32 %v63, 24
    %vm67 = vcmp.lt.s32.totalorder %v63, 0
    %v68 = vsub.s32 0, %v63
    %v69 = vsel %vm67, %v68, %v63
    %v70 = vshrl.u32 %v69, 4
    %v71 = vand.u32 %v69, 15
    %v72 = vsub.s32 0, %v71
    %v73 = vsel %vm67, %v72, %v71
    %vm74 = vcmp.lt.s32.totalorder %v64, 0
    %v75 = vsub.s32 0, %v64
    %v76 = vsel %vm74, %v75, %v64
    %v77 = vshrl.u32 %v76, 4
    %v78 = vand.u32 %v76, 15
    %v79 = vsub.s32 0, %v78
    %v80 = vsel %vm74, %v79, %v78
    %vm81 = vcmp.lt.s32.totalorder %v65, 0
    %v82 = vsub.s32 0, %v65
    %v83 = vsel %vm81, %v82, %v65
    %v84 = vshrl.u32 %v83, 4
    %v85 = vand.u32 %v83, 15
    %v86 = vsub.s32 0, %v85
    %v87 = vsel %vm81, %v86, %v85
    %vm88 = vcmp.lt.s32.totalorder %v66, 0
    %v89 = vsub.s32 0, %v66
    %v90 = vsel %vm88, %v89, %v66
    %v91 = vshrl.u32 %v90, 4
    %v92 = vand.u32 %v90, 15
    %v93 = vsub.s32 0, %v92
    %v94 = vsel %vm88, %v93, %v92
    %vm95 = vcmp.ne.s32.totalorder %v73, 0
    %vm96 = vcmp.ne.s32.totalorder %v80, 0
    %vm97 = vcmp.ne.s32.totalorder %v87, 0
    %vm98 = vcmp.ne.s32.totalorder %v94, 0
    %vm99 = vcmp.lt.s32.totalorder %v73, 0
    %vm100 = vcmp.lt.s32.totalorder %v80, 0
    %vm101 = vcmp.lt.s32.totalorder %v87, 0
    %vm102 = vcmp.lt.s32.totalorder %v94, 0
    %vm103 = vmand %vm99, %vm95
    %vm104 = vmand %vm100, %vm96
    %vm105 = vmand %vm101, %vm97
    %vm106 = vmand %vm102, %vm98
    %v107 = vadd.s32 %v73, 16
    %v108 = vadd.s32 %v80, 16
    %v109 = vadd.s32 %v87, 16
    %v110 = vadd.s32 %v94, 16
    %v111 = vsel %vm103, %v107, %v73
    %v112 = vsel %vm104, %v108, %v80
    %v113 = vsel %vm105, %v109, %v87
    %v114 = vsel %vm106, %v110, %v94
    %vm115 = vcmp.eq.s32.totalorder %v111, 0
    %vm116 = vcmp.eq.s32.totalorder %v112, 0
    %vm117 = vcmp.eq.s32.totalorder %v113, 0
    %vm118 = vcmp.eq.s32.totalorder %v114, 0
    %vm119 = vcmp.eq.s32.totalorder %v111, 15
    %vm120 = vcmp.eq.s32.totalorder %v112, 15
    %vm121 = vcmp.eq.s32.totalorder %v113, 15
    %vm122 = vcmp.eq.s32.totalorder %v114, 15
    %v123 = vld [vmem:[#allocation2] sm:$0xff]
    %v124 = vld [vmem:[#allocation2 + $0x8] sm:$0xff]
    %v125 = vld [vmem:[#allocation2 + $0x10] sm:$0xff]
    %v126 = vld [vmem:[#allocation2 + $0x18] sm:$0xff]
    %v127 = vrot.slane %v123, 7
    %v128 = vrot.slane %v124, 7
    %v129 = vrot.slane %v125, 7
    %v130 = vrot.slane %v126, 7
    %vm131 = vcmp.lt.s32.totalorder %v63, 1
    %v132 = vsel %vm131, %v129, %v130
    %v133 = vsel %vm131, %v128, %v129
    %v134 = vsel %vm131, %v127, %v128
    %v135 = vsel %vm131, %v130, %v127
    %v136 = vsel %vm115, 1, 0
    %v137 = vsel %vm116, 1, 0
    %v138 = vsel %vm117, 1, 0
    %v139 = vsel %vm118, 1, 0
    %vm140 = vcmp.eq.s32.totalorder %v136, 1
    %vm141 = vcmp.eq.s32.totalorder %v137, 1
    %vm142 = vcmp.eq.s32.totalorder %v138, 1
    %vm143 = vcmp.eq.s32.totalorder %v139, 1
    %v144 = vsel %vm140, 0.0, %v135
    %v145 = vsel %vm141, 0.0, %v134
    %v146 = vsel %vm142, 0.0, %v133
    %v147 = vsel %vm143, 0.0, %v132
    %v148 = vrot.slane %v123, 1
    %v149 = vrot.slane %v124, 1
    %v150 = vrot.slane %v125, 1
    %v151 = vrot.slane %v126, 1
    %vm152 = vcmp.lt.s32.totalorder %v63, 7
    %v153 = vsel %vm152, %v150, %v151
    %v154 = vsel %vm152, %v149, %v150
    %v155 = vsel %vm152, %v148, %v149
    %v156 = vsel %vm152, %v151, %v148
    %v157 = vsel %vm119, 1, 0
    %v158 = vsel %vm120, 1, 0
    %v159 = vsel %vm121, 1, 0
    %v160 = vsel %vm122, 1, 0
    %vm161 = vcmp.eq.s32.totalorder %v157, 1
    %vm162 = vcmp.eq.s32.totalorder %v158, 1
    %vm163 = vcmp.eq.s32.totalorder %v159, 1
    %vm164 = vcmp.eq.s32.totalorder %v160, 1
    %v165 = vsel %vm161, 0.0, %v155
    %v166 = vsel %vm162, 0.0, %v154
    %v167 = vsel %vm163, 0.0, %v153
    %v168 = vsel %vm164, 0.0, %v156
    %v169 = vld [vmem:[#allocation5] sm:$0xff]
    %v170 = vld [vmem:[#allocation5 + $0x8] sm:$0xff]
    %v171 = vld [vmem:[#allocation5 + $0x10] sm:$0xff]
    %v172 = vld [vmem:[#allocation5 + $0x18] sm:$0xff]
    %v173 = vld [vmem:[#allocation5 + $0x20] sm:$0xff]
    %v174 = vld [vmem:[#allocation5 + $0x28] sm:$0xff]
    %v175 = vld [vmem:[#allocation5 + $0x30] sm:$0xff]
    %v176 = vld [vmem:[#allocation5 + $0x38] sm:$0xff]
    %s177 = scalar_lea.vmem [#allocation5], 64
    %v178 = vld [vmem:[%s177] sm:$0xff]
    %v179 = vld [vmem:[%s177 + $0x8] sm:$0xff]
    %v180 = vld [vmem:[%s177 + $0x10] sm:$0xff]
    %v181 = vld [vmem:[%s177 + $0x18] sm:$0xff]
    %v182 = vld [vmem:[%s177 + $0x20] sm:$0xff]
    %v183 = vld [vmem:[%s177 + $0x28] sm:$0xff]
    %v184 = vld [vmem:[%s177 + $0x30] sm:$0xff]
    %v185 = vld [vmem:[%s177 + $0x38] sm:$0xff]
    %vm186 = vcmask 523264
    %v188 = vsel %vm186, %v123, 0
    %v191 = vsel %vm186, %v124, 0
    %v194 = vsel %vm186, %v125, 0
    %v197 = vsel %vm186, %v126, 0
    %199 = vmatprep.subr.mxu0 0.0
    %200 = vmatpush1.msra.mxu0 %v178
    %201 = vmatprep.subr.mxu0 0.0
    %202 = vmatpush1.msra.mxu0 %v179
    %203 = vmatprep.subr.mxu0 0.0
    %204 = vmatpush1.msra.mxu0 %v180
    %205 = vmatprep.subr.mxu0 0.0
    %206 = vmatpush1.msra.mxu0 %v181
    %207 = vmatprep.subr.mxu0 0.0
    %208 = vmatpush1.msra.mxu0 %v182
    %209 = vmatprep.subr.mxu0 0.0
    %210 = vmatpush1.msra.mxu0 %v183
    %211 = vmatprep.subr.mxu0 0.0
    %212 = vmatpush1.msra.mxu0 %v184
    %213 = vmatprep.subr.mxu0 0.0
    %214 = vmatpush1.msra.mxu0 %v185
    %215 = vmatprep.subr.mxu0 0.0
    %216 = vmatpush1.msra.mxu0 0.0
    %217 = vmatprep.subr.mxu0 0.0
    %218 = vmatpush1.msra.mxu0 0.0
    %219 = vmatprep.subr.mxu0 0.0
    %220 = vmatpush1.msra.mxu0 0.0
    %221 = vmatprep.subr.mxu0 0.0
    %222 = vmatpush1.msra.mxu0 0.0
    %223 = vmatprep.subr.mxu0 0.0
    %224 = vmatpush1.msra.mxu0 0.0
    %225 = vmatprep.subr.mxu0 0.0
    %226 = vmatpush1.msra.mxu0 0.0
    %227 = vmatprep.subr.mxu0 0.0
    %228 = vmatpush1.msra.mxu0 0.0
    %229 = vmatprep.subr.mxu0 0.0
    %230 = vmatpush1.msra.mxu0 0.0
    %231 = vmatprep.subr.mxu0 0.0
    %232 = vmatpush1.msra.mxu0 0.0
    %233 = vmatprep.subr.mxu0 0.0
    %234 = vmatpush1.msra.mxu0 0.0
    %235 = vmatprep.subr.mxu0 0.0
    %236 = vmatpush1.msra.mxu0 0.0
    %237 = vmatprep.subr.mxu0 0.0
    %238 = vmatpush1.msra.mxu0 0.0
    %239 = vmatprep.subr.mxu0 0.0
    %240 = vmatpush1.msra.mxu0 0.0
    %241 = vmatprep.subr.mxu0 0.0
    %242 = vmatpush1.msra.mxu0 0.0
    %243 = vmatprep.subr.mxu0 0.0
    %244 = vmatpush1.msra.mxu0 0.0
    %245 = vmatprep.subr.mxu0 0.0
    %246 = vmatpush1.msra.mxu0 0.0
    %247 = vmatprep.subr.mxu0 0.0
    %248 = vmatpush1.msra.mxu0 0.0
    %249 = vmatprep.subr.mxu0 0.0
    %250 = vmatpush1.msra.mxu0 0.0
    %251 = vmatprep.subr.mxu0 0.0
    %252 = vmatpush1.msra.mxu0 0.0
    %253 = vmatprep.subr.mxu0 0.0
    %254 = vmatpush1.msra.mxu0 0.0
    %255 = vmatprep.subr.mxu0 0.0
    %256 = vmatpush1.msra.mxu0 0.0
    %257 = vmatprep.subr.mxu0 0.0
    %258 = vmatpush1.msra.mxu0 0.0
    %259 = vmatprep.subr.mxu0 0.0
    %260 = vmatpush1.msra.mxu0 0.0
    %261 = vmatprep.subr.mxu0 0.0
    %262 = vmatpush1.msra.mxu0 0.0
    %263 = vmatprep.mubr.f32.mxu0 0.0
    %264 = vmatmul.mubr.f32.gmra.mrb[0].mxu0 %v188
    %v265 = vpop.f32.mrb[0].mxu0
    %v266 = vadd.f32 0.0, %v265
    %v267 = vpop.f32.mrb[0].mxu0
    %268 = vmatprep.mubr.f32.mxu0 0.0
    %269 = vmatmul.mubr.f32.gmra.mrb[0].mxu0 %v191
    %v270 = vpop.f32.mrb[0].mxu0
    %v271 = vadd.f32 0.0, %v270
    %v272 = vpop.f32.mrb[0].mxu0
    %273 = vmatprep.mubr.f32.mxu0 0.0
    %274 = vmatmul.mubr.f32.gmra.mrb[0].mxu0 %v194
    %v275 = vpop.f32.mrb[0].mxu0
    %v276 = vadd.f32 0.0, %v275
    %v277 = vpop.f32.mrb[0].mxu0
    %278 = vmatprep.mubr.f32.mxu0 0.0
    %279 = vmatmul.mubr.f32.gmra.mrb[0].mxu0 %v197
    %v280 = vpop.f32.mrb[0].mxu0
    %v281 = vadd.f32 0.0, %v280
    %v282 = vpop.f32.mrb[0].mxu0
    %283 = vdwg.mxu0
    %v285 = vsel %vm186, %v144, 0
    %v288 = vsel %vm186, %v145, 0
    %v291 = vsel %vm186, %v146, 0
    %v294 = vsel %vm186, %v147, 0
    %296 = vmatprep.subr.mxu0 0.0
    %297 = vmatpush1.msra.mxu0 %v169
    %298 = vmatprep.subr.mxu0 0.0
    %299 = vmatpush1.msra.mxu0 %v170
    %300 = vmatprep.subr.mxu0 0.0
    %301 = vmatpush1.msra.mxu0 %v171
    %302 = vmatprep.subr.mxu0 0.0
    %303 = vmatpush1.msra.mxu0 %v172
    %304 = vmatprep.subr.mxu0 0.0
    %305 = vmatpush1.msra.mxu0 %v173
    %306 = vmatprep.subr.mxu0 0.0
    %307 = vmatpush1.msra.mxu0 %v174
    %308 = vmatprep.subr.mxu0 0.0
    %309 = vmatpush1.msra.mxu0 %v175
    %310 = vmatprep.subr.mxu0 0.0
    %311 = vmatpush1.msra.mxu0 %v176
    %312 = vmatprep.subr.mxu0 0.0
    %313 = vmatpush1.msra.mxu0 0.0
    %314 = vmatprep.subr.mxu0 0.0
    %315 = vmatpush1.msra.mxu0 0.0
    %316 = vmatprep.subr.mxu0 0.0
    %317 = vmatpush1.msra.mxu0 0.0
    %318 = vmatprep.subr.mxu0 0.0
    %319 = vmatpush1.msra.mxu0 0.0
    %320 = vmatprep.subr.mxu0 0.0
    %321 = vmatpush1.msra.mxu0 0.0
    %322 = vmatprep.subr.mxu0 0.0
    %323 = vmatpush1.msra.mxu0 0.0
    %324 = vmatprep.subr.mxu0 0.0
    %325 = vmatpush1.msra.mxu0 0.0
    %326 = vmatprep.subr.mxu0 0.0
    %327 = vmatpush1.msra.mxu0 0.0
    %328 = vmatprep.subr.mxu0 0.0
    %329 = vmatpush1.msra.mxu0 0.0
    %330 = vmatprep.subr.mxu0 0.0
    %331 = vmatpush1.msra.mxu0 0.0
    %332 = vmatprep.subr.mxu0 0.0
    %333 = vmatpush1.msra.mxu0 0.0
    %334 = vmatprep.subr.mxu0 0.0
    %335 = vmatpush1.msra.mxu0 0.0
    %336 = vmatprep.subr.mxu0 0.0
    %337 = vmatpush1.msra.mxu0 0.0
    %338 = vmatprep.subr.mxu0 0.0
    %339 = vmatpush1.msra.mxu0 0.0
    %340 = vmatprep.subr.mxu0 0.0
    %341 = vmatpush1.msra.mxu0 0.0
    %342 = vmatprep.subr.mxu0 0.0
    %343 = vmatpush1.msra.mxu0 0.0
    %344 = vmatprep.subr.mxu0 0.0
    %345 = vmatpush1.msra.mxu0 0.0
    %346 = vmatprep.subr.mxu0 0.0
    %347 = vmatpush1.msra.mxu0 0.0
    %348 = vmatprep.subr.mxu0 0.0
    %349 = vmatpush1.msra.mxu0 0.0
    %350 = vmatprep.subr.mxu0 0.0
    %351 = vmatpush1.msra.mxu0 0.0
    %352 = vmatprep.subr.mxu0 0.0
    %353 = vmatpush1.msra.mxu0 0.0
    %354 = vmatprep.subr.mxu0 0.0
    %355 = vmatpush1.msra.mxu0 0.0
    %356 = vmatprep.subr.mxu0 0.0
    %357 = vmatpush1.msra.mxu0 0.0
    %358 = vmatprep.subr.mxu0 0.0
    %359 = vmatpush1.msra.mxu0 0.0
    %360 = vmatprep.mubr.f32.mxu0 0.0
    %361 = vmatmul.mubr.f32.gmra.mrb[0].mxu0 %v285
    %v362 = vpop.f32.mrb[0].mxu0
    %v363 = vadd.f32 %v266, %v362
    %v364 = vpop.f32.mrb[0].mxu0
    %365 = vmatprep.mubr.f32.mxu0 0.0
    %366 = vmatmul.mubr.f32.gmra.mrb[0].mxu0 %v288
    %v367 = vpop.f32.mrb[0].mxu0
    %v368 = vadd.f32 %v271, %v367
    %v369 = vpop.f32.mrb[0].mxu0
    %370 = vmatprep.mubr.f32.mxu0 0.0
    %371 = vmatmul.mubr.f32.gmra.mrb[0].mxu0 %v291
    %v372 = vpop.f32.mrb[0].mxu0
    %v373 = vadd.f32 %v276, %v372
    %v374 = vpop.f32.mrb[0].mxu0
    %375 = vmatprep.mubr.f32.mxu0 0.0
    %376 = vmatmul.mubr.f32.gmra.mrb[0].mxu0 %v294
    %v377 = vpop.f32.mrb[0].mxu0
    %v378 = vadd.f32 %v281, %v377
    %v379 = vpop.f32.mrb[0].mxu0
    %380 = vdwg.mxu0
    %s381 = scalar_lea.vmem [#allocation5], 128
    %v382 = vld [vmem:[%s381] sm:$0xff]
    %v383 = vld [vmem:[%s381 + $0x8] sm:$0xff]
    %v384 = vld [vmem:[%s381 + $0x10] sm:$0xff]
    %v385 = vld [vmem:[%s381 + $0x18] sm:$0xff]
    %v386 = vld [vmem:[%s381 + $0x20] sm:$0xff]
    %v387 = vld [vmem:[%s381 + $0x28] sm:$0xff]
    %v388 = vld [vmem:[%s381 + $0x30] sm:$0xff]
    %v389 = vld [vmem:[%s381 + $0x38] sm:$0xff]
    %v391 = vsel %vm186, %v165, 0
    %v394 = vsel %vm186, %v166, 0
    %v397 = vsel %vm186, %v167, 0
    %v400 = vsel %vm186, %v168, 0
    %402 = vmatprep.subr.mxu0 0.0
    %403 = vmatpush1.msra.mxu0 %v382
    %404 = vmatprep.subr.mxu0 0.0
    %405 = vmatpush1.msra.mxu0 %v383
    %406 = vmatprep.subr.mxu0 0.0
    %407 = vmatpush1.msra.mxu0 %v384
    %408 = vmatprep.subr.mxu0 0.0
    %409 = vmatpush1.msra.mxu0 %v385
    %410 = vmatprep.subr.mxu0 0.0
    %411 = vmatpush1.msra.mxu0 %v386
    %412 = vmatprep.subr.mxu0 0.0
    %413 = vmatpush1.msra.mxu0 %v387
    %414 = vmatprep.subr.mxu0 0.0
    %415 = vmatpush1.msra.mxu0 %v388
    %416 = vmatprep.subr.mxu0 0.0
    %417 = vmatpush1.msra.mxu0 %v389
    %418 = vmatprep.subr.mxu0 0.0
    %419 = vmatpush1.msra.mxu0 0.0
    %420 = vmatprep.subr.mxu0 0.0
    %421 = vmatpush1.msra.mxu0 0.0
    %422 = vmatprep.subr.mxu0 0.0
    %423 = vmatpush1.msra.mxu0 0.0
    %424 = vmatprep.subr.mxu0 0.0
    %425 = vmatpush1.msra.mxu0 0.0
    %426 = vmatprep.subr.mxu0 0.0
    %427 = vmatpush1.msra.mxu0 0.0
    %428 = vmatprep.subr.mxu0 0.0
    %429 = vmatpush1.msra.mxu0 0.0
    %430 = vmatprep.subr.mxu0 0.0
    %431 = vmatpush1.msra.mxu0 0.0
    %432 = vmatprep.subr.mxu0 0.0
    %433 = vmatpush1.msra.mxu0 0.0
    %434 = vmatprep.subr.mxu0 0.0
    %435 = vmatpush1.msra.mxu0 0.0
    %436 = vmatprep.subr.mxu0 0.0
    %437 = vmatpush1.msra.mxu0 0.0
    %438 = vmatprep.subr.mxu0 0.0
    %439 = vmatpush1.msra.mxu0 0.0
    %440 = vmatprep.subr.mxu0 0.0
    %441 = vmatpush1.msra.mxu0 0.0
    %442 = vmatprep.subr.mxu0 0.0
    %443 = vmatpush1.msra.mxu0 0.0
    %444 = vmatprep.subr.mxu0 0.0
    %445 = vmatpush1.msra.mxu0 0.0
    %446 = vmatprep.subr.mxu0 0.0
    %447 = vmatpush1.msra.mxu0 0.0
    %448 = vmatprep.subr.mxu0 0.0
    %449 = vmatpush1.msra.mxu0 0.0
    %450 = vmatprep.subr.mxu0 0.0
    %451 = vmatpush1.msra.mxu0 0.0
    %452 = vmatprep.subr.mxu0 0.0
    %453 = vmatpush1.msra.mxu0 0.0
    %454 = vmatprep.subr.mxu0 0.0
    %455 = vmatpush1.msra.mxu0 0.0
    %456 = vmatprep.subr.mxu0 0.0
    %457 = vmatpush1.msra.mxu0 0.0
    %458 = vmatprep.subr.mxu0 0.0
    %459 = vmatpush1.msra.mxu0 0.0
    %460 = vmatprep.subr.mxu0 0.0
    %461 = vmatpush1.msra.mxu0 0.0
    %462 = vmatprep.subr.mxu0 0.0
    %463 = vmatpush1.msra.mxu0 0.0
    %464 = vmatprep.subr.mxu0 0.0
    %465 = vmatpush1.msra.mxu0 0.0
    %466 = vmatprep.mubr.f32.mxu0 0.0
    %467 = vmatmul.mubr.f32.gmra.mrb[0].mxu0 %v391
    %v468 = vpop.f32.mrb[0].mxu0
    %v469 = vadd.f32 0.0, %v468
    %v470 = vpop.f32.mrb[0].mxu0
    %471 = vmatprep.mubr.f32.mxu0 0.0
    %472 = vmatmul.mubr.f32.gmra.mrb[0].mxu0 %v394
    %v473 = vpop.f32.mrb[0].mxu0
    %v474 = vadd.f32 0.0, %v473
    %v475 = vpop.f32.mrb[0].mxu0
    %476 = vmatprep.mubr.f32.mxu0 0.0
    %477 = vmatmul.mubr.f32.gmra.mrb[0].mxu0 %v397
    %v478 = vpop.f32.mrb[0].mxu0
    %v479 = vadd.f32 0.0, %v478
    %v480 = vpop.f32.mrb[0].mxu0
    %481 = vmatprep.mubr.f32.mxu0 0.0
    %482 = vmatmul.mubr.f32.gmra.mrb[0].mxu0 %v400
    %v483 = vpop.f32.mrb[0].mxu0
    %v484 = vadd.f32 0.0, %v483
    %v485 = vpop.f32.mrb[0].mxu0
    %486 = vdwg.mxu0
    %v487 = vadd.f32 %v363, %v469
    %v488 = vadd.f32 %v368, %v474
    %v489 = vadd.f32 %v373, %v479
    %v490 = vadd.f32 %v378, %v484
    %v491 = vld [vmem:[%s2] sm:$0x1]
    %v493 = vlaneseq
    %v494 = vshrl.u32 %v493, 7
    %v495 = vsub.s32 0, %v494
    %v496 = vrot.slane %v491, %v495
    %v498 = vadd.f32 %v487, %v496
    %v499 = vadd.f32 %v488, %v496
    %v500 = vadd.f32 %v489, %v496
    %v501 = vadd.f32 %v490, %v496
    %v502 = vmax.f32 %v498, 0.0
    %v503 = vmax.f32 %v499, 0.0
    %v504 = vmax.f32 %v500, 0.0
    %v505 = vmax.f32 %v501, 0.0
    %v506 = vrot.slane %v502, 7
    %v507 = vrot.slane %v503, 7
    %v508 = vrot.slane %v504, 7
    %v509 = vrot.slane %v505, 7
    %v510 = vsel %vm131, %v508, %v509
    %v511 = vsel %vm131, %v507, %v508
    %v512 = vsel %vm131, %v506, %v507
    %v513 = vsel %vm131, %v509, %v506
    %v514 = vsel %vm140, 0.0, %v513
    %v515 = vsel %vm141, 0.0, %v512
    %v516 = vsel %vm142, 0.0, %v511
    %v517 = vsel %vm143, 0.0, %v510
    %v518 = vrot.slane %v502, 1
    %v519 = vrot.slane %v503, 1
    %v520 = vrot.slane %v504, 1
    %v521 = vrot.slane %v505, 1
    %v522 = vsel %vm152, %v520, %v521
    %v523 = vsel %vm152, %v519, %v520
    %v524 = vsel %vm152, %v518, %v519
    %v525 = vsel %vm152, %v521, %v518
    %v526 = vsel %vm161, 0.0, %v524
    %v527 = vsel %vm162, 0.0, %v523
    %v528 = vsel %vm163, 0.0, %v522
    %v529 = vsel %vm164, 0.0, %v525
    %v530 = vld [vmem:[#allocation7] sm:$0xff]
    %v531 = vld [vmem:[#allocation7 + $0x8] sm:$0xff]
    %v532 = vld [vmem:[#allocation7 + $0x10] sm:$0xff]
    %v533 = vld [vmem:[#allocation7 + $0x18] sm:$0xff]
    %v534 = vld [vmem:[#allocation7 + $0x20] sm:$0xff]
    %v535 = vld [vmem:[#allocation7 + $0x28] sm:$0xff]
    %v536 = vld [vmem:[#allocation7 + $0x30] sm:$0xff]
    %v537 = vld [vmem:[#allocation7 + $0x38] sm:$0xff]
    %v538 = vld [vmem:[#allocation7 + $0x40] sm:$0xff]
    %v539 = vld [vmem:[#allocation7 + $0x48] sm:$0xff]
    %v540 = vld [vmem:[#allocation7 + $0x50] sm:$0xff]
    %v541 = vld [vmem:[#allocation7 + $0x58] sm:$0xff]
    %v542 = vld [vmem:[#allocation7 + $0x60] sm:$0xff]
    %v543 = vld [vmem:[#allocation7 + $0x68] sm:$0xff]
    %v544 = vld [vmem:[#allocation7 + $0x70] sm:$0xff]
    %v545 = vld [vmem:[#allocation7 + $0x78] sm:$0xff]
    %s546 = scalar_lea.vmem [#allocation7], 128
    %v547 = vld [vmem:[%s546] sm:$0xff]
    %v548 = vld [vmem:[%s546 + $0x8] sm:$0xff]
    %v549 = vld [vmem:[%s546 + $0x10] sm:$0xff]
    %v550 = vld [vmem:[%s546 + $0x18] sm:$0xff]
    %v551 = vld [vmem:[%s546 + $0x20] sm:$0xff]
    %v552 = vld [vmem:[%s546 + $0x28] sm:$0xff]
    %v553 = vld [vmem:[%s546 + $0x30] sm:$0xff]
    %v554 = vld [vmem:[%s546 + $0x38] sm:$0xff]
    %v555 = vld [vmem:[%s546 + $0x40] sm:$0xff]
    %v556 = vld [vmem:[%s546 + $0x48] sm:$0xff]
    %v557 = vld [vmem:[%s546 + $0x50] sm:$0xff]
    %v558 = vld [vmem:[%s546 + $0x58] sm:$0xff]
    %v559 = vld [vmem:[%s546 + $0x60] sm:$0xff]
    %v560 = vld [vmem:[%s546 + $0x68] sm:$0xff]
    %v561 = vld [vmem:[%s546 + $0x70] sm:$0xff]
    %v562 = vld [vmem:[%s546 + $0x78] sm:$0xff]
    %563 = vmatprep.subr.mxu0 0.0
    %564 = vmatpush1.msra.mxu0 %v547
    %565 = vmatprep.subr.mxu0 0.0
    %566 = vmatpush1.msra.mxu0 %v548
    %567 = vmatprep.subr.mxu0 0.0
    %568 = vmatpush1.msra.mxu0 %v549
    %569 = vmatprep.subr.mxu0 0.0
    %570 = vmatpush1.msra.mxu0 %v550
    %571 = vmatprep.subr.mxu0 0.0
    %572 = vmatpush1.msra.mxu0 %v551
    %573 = vmatprep.subr.mxu0 0.0
    %574 = vmatpush1.msra.mxu0 %v552
    %575 = vmatprep.subr.mxu0 0.0
    %576 = vmatpush1.msra.mxu0 %v553
    %577 = vmatprep.subr.mxu0 0.0
    %578 = vmatpush1.msra.mxu0 %v554
    %579 = vmatprep.subr.mxu0 0.0
    %580 = vmatpush1.msra.mxu0 %v555
    %581 = vmatprep.subr.mxu0 0.0
    %582 = vmatpush1.msra.mxu0 %v556
    %583 = vmatprep.subr.mxu0 0.0
    %584 = vmatpush1.msra.mxu0 %v557
    %585 = vmatprep.subr.mxu0 0.0
    %586 = vmatpush1.msra.mxu0 %v558
    %587 = vmatprep.subr.mxu0 0.0
    %588 = vmatpush1.msra.mxu0 %v559
    %589 = vmatprep.subr.mxu0 0.0
    %590 = vmatpush1.msra.mxu0 %v560
    %591 = vmatprep.subr.mxu0 0.0
    %592 = vmatpush1.msra.mxu0 %v561
    %593 = vmatprep.subr.mxu0 0.0
    %594 = vmatpush1.msra.mxu0 %v562
    %595 = vmatprep.subr.mxu0 0.0
    %596 = vmatpush1.msra.mxu0 0.0
    %597 = vmatprep.subr.mxu0 0.0
    %598 = vmatpush1.msra.mxu0 0.0
    %599 = vmatprep.subr.mxu0 0.0
    %600 = vmatpush1.msra.mxu0 0.0
    %601 = vmatprep.subr.mxu0 0.0
    %602 = vmatpush1.msra.mxu0 0.0
    %603 = vmatprep.subr.mxu0 0.0
    %604 = vmatpush1.msra.mxu0 0.0
    %605 = vmatprep.subr.mxu0 0.0
    %606 = vmatpush1.msra.mxu0 0.0
    %607 = vmatprep.subr.mxu0 0.0
    %608 = vmatpush1.msra.mxu0 0.0
    %609 = vmatprep.subr.mxu0 0.0
    %610 = vmatpush1.msra.mxu0 0.0
    %611 = vmatprep.subr.mxu0 0.0
    %612 = vmatpush1.msra.mxu0 0.0
    %613 = vmatprep.subr.mxu0 0.0
    %614 = vmatpush1.msra.mxu0 0.0
    %615 = vmatprep.subr.mxu0 0.0
    %616 = vmatpush1.msra.mxu0 0.0
    %617 = vmatprep.subr.mxu0 0.0
    %618 = vmatpush1.msra.mxu0 0.0
    %619 = vmatprep.subr.mxu0 0.0
    %620 = vmatpush1.msra.mxu0 0.0
    %621 = vmatprep.subr.mxu0 0.0
    %622 = vmatpush1.msra.mxu0 0.0
    %623 = vmatprep.subr.mxu0 0.0
    %624 = vmatpush1.msra.mxu0 0.0
    %625 = vmatprep.subr.mxu0 0.0
    %626 = vmatpush1.msra.mxu0 0.0
    %627 = vmatprep.mubr.f32.mxu0 0.0
    %628 = vmatmul.mubr.f32.gmra.mrb[0].mxu0 %v502
    %v629 = vpop.f32.mrb[0].mxu0
    %v630 = vadd.f32 0.0, %v629
    %v631 = vpop.f32.mrb[0].mxu0
    %632 = vmatprep.mubr.f32.mxu0 0.0
    %633 = vmatmul.mubr.f32.gmra.mrb[0].mxu0 %v503
    %v634 = vpop.f32.mrb[0].mxu0
    %v635 = vadd.f32 0.0, %v634
    %v636 = vpop.f32.mrb[0].mxu0
    %637 = vmatprep.mubr.f32.mxu0 0.0
    %638 = vmatmul.mubr.f32.gmra.mrb[0].mxu0 %v504
    %v639 = vpop.f32.mrb[0].mxu0
    %v640 = vadd.f32 0.0, %v639
    %v641 = vpop.f32.mrb[0].mxu0
    %642 = vmatprep.mubr.f32.mxu0 0.0
    %643 = vmatmul.mubr.f32.gmra.mrb[0].mxu0 %v505
    %v644 = vpop.f32.mrb[0].mxu0
    %v645 = vadd.f32 0.0, %v644
    %v646 = vpop.f32.mrb[0].mxu0
    %647 = vdwg.mxu0
    %648 = vmatprep.subr.mxu0 0.0
    %649 = vmatpush1.msra.mxu0 %v530
    %650 = vmatprep.subr.mxu0 0.0
    %651 = vmatpush1.msra.mxu0 %v531
    %652 = vmatprep.subr.mxu0 0.0
    %653 = vmatpush1.msra.mxu0 %v532
    %654 = vmatprep.subr.mxu0 0.0
    %655 = vmatpush1.msra.mxu0 %v533
    %656 = vmatprep.subr.mxu0 0.0
    %657 = vmatpush1.msra.mxu0 %v534
    %658 = vmatprep.subr.mxu0 0.0
    %659 = vmatpush1.msra.mxu0 %v535
    %660 = vmatprep.subr.mxu0 0.0
    %661 = vmatpush1.msra.mxu0 %v536
    %662 = vmatprep.subr.mxu0 0.0
    %663 = vmatpush1.msra.mxu0 %v537
    %664 = vmatprep.subr.mxu0 0.0
    %665 = vmatpush1.msra.mxu0 %v538
    %666 = vmatprep.subr.mxu0 0.0
    %667 = vmatpush1.msra.mxu0 %v539
    %668 = vmatprep.subr.mxu0 0.0
    %669 = vmatpush1.msra.mxu0 %v540
    %670 = vmatprep.subr.mxu0 0.0
    %671 = vmatpush1.msra.mxu0 %v541
    %672 = vmatprep.subr.mxu0 0.0
    %673 = vmatpush1.msra.mxu0 %v542
    %674 = vmatprep.subr.mxu0 0.0
    %675 = vmatpush1.msra.mxu0 %v543
    %676 = vmatprep.subr.mxu0 0.0
    %677 = vmatpush1.msra.mxu0 %v544
    %678 = vmatprep.subr.mxu0 0.0
    %679 = vmatpush1.msra.mxu0 %v545
    %680 = vmatprep.subr.mxu0 0.0
    %681 = vmatpush1.msra.mxu0 0.0
    %682 = vmatprep.subr.mxu0 0.0
    %683 = vmatpush1.msra.mxu0 0.0
    %684 = vmatprep.subr.mxu0 0.0
    %685 = vmatpush1.msra.mxu0 0.0
    %686 = vmatprep.subr.mxu0 0.0
    %687 = vmatpush1.msra.mxu0 0.0
    %688 = vmatprep.subr.mxu0 0.0
    %689 = vmatpush1.msra.mxu0 0.0
    %690 = vmatprep.subr.mxu0 0.0
    %691 = vmatpush1.msra.mxu0 0.0
    %692 = vmatprep.subr.mxu0 0.0
    %693 = vmatpush1.msra.mxu0 0.0
    %694 = vmatprep.subr.mxu0 0.0
    %695 = vmatpush1.msra.mxu0 0.0
    %696 = vmatprep.subr.mxu0 0.0
    %697 = vmatpush1.msra.mxu0 0.0
    %698 = vmatprep.subr.mxu0 0.0
    %699 = vmatpush1.msra.mxu0 0.0
    %700 = vmatprep.subr.mxu0 0.0
    %701 = vmatpush1.msra.mxu0 0.0
    %702 = vmatprep.subr.mxu0 0.0
    %703 = vmatpush1.msra.mxu0 0.0
    %704 = vmatprep.subr.mxu0 0.0
    %705 = vmatpush1.msra.mxu0 0.0
    %706 = vmatprep.subr.mxu0 0.0
    %707 = vmatpush1.msra.mxu0 0.0
    %708 = vmatprep.subr.mxu0 0.0
    %709 = vmatpush1.msra.mxu0 0.0
    %710 = vmatprep.subr.mxu0 0.0
    %711 = vmatpush1.msra.mxu0 0.0
    %712 = vmatprep.mubr.f32.mxu0 0.0
    %713 = vmatmul.mubr.f32.gmra.mrb[0].mxu0 %v514
    %v714 = vpop.f32.mrb[0].mxu0
    %v715 = vadd.f32 %v630, %v714
    %v716 = vpop.f32.mrb[0].mxu0
    %717 = vmatprep.mubr.f32.mxu0 0.0
    %718 = vmatmul.mubr.f32.gmra.mrb[0].mxu0 %v515
    %v719 = vpop.f32.mrb[0].mxu0
    %v720 = vadd.f32 %v635, %v719
    %v721 = vpop.f32.mrb[0].mxu0
    %722 = vmatprep.mubr.f32.mxu0 0.0
    %723 = vmatmul.mubr.f32.gmra.mrb[0].mxu0 %v516
    %v724 = vpop.f32.mrb[0].mxu0
    %v725 = vadd.f32 %v640, %v724
    %v726 = vpop.f32.mrb[0].mxu0
    %727 = vmatprep.mubr.f32.mxu0 0.0
    %728 = vmatmul.mubr.f32.gmra.mrb[0].mxu0 %v517
    %v729 = vpop.f32.mrb[0].mxu0
    %v730 = vadd.f32 %v645, %v729
    %v731 = vpop.f32.mrb[0].mxu0
    %732 = vdwg.mxu0
    %s733 = scalar_lea.vmem [#allocation7], 256
    %v734 = vld [vmem:[%s733] sm:$0xff]
    %v735 = vld [vmem:[%s733 + $0x8] sm:$0xff]
    %v736 = vld [vmem:[%s733 + $0x10] sm:$0xff]
    %v737 = vld [vmem:[%s733 + $0x18] sm:$0xff]
    %v738 = vld [vmem:[%s733 + $0x20] sm:$0xff]
    %v739 = vld [vmem:[%s733 + $0x28] sm:$0xff]
    %v740 = vld [vmem:[%s733 + $0x30] sm:$0xff]
    %v741 = vld [vmem:[%s733 + $0x38] sm:$0xff]
    %v742 = vld [vmem:[%s733 + $0x40] sm:$0xff]
    %v743 = vld [vmem:[%s733 + $0x48] sm:$0xff]
    %v744 = vld [vmem:[%s733 + $0x50] sm:$0xff]
    %v745 = vld [vmem:[%s733 + $0x58] sm:$0xff]
    %v746 = vld [vmem:[%s733 + $0x60] sm:$0xff]
    %v747 = vld [vmem:[%s733 + $0x68] sm:$0xff]
    %v748 = vld [vmem:[%s733 + $0x70] sm:$0xff]
    %v749 = vld [vmem:[%s733 + $0x78] sm:$0xff]
    %750 = vmatprep.subr.mxu0 0.0
    %751 = vmatpush1.msra.mxu0 %v734
    %752 = vmatprep.subr.mxu0 0.0
    %753 = vmatpush1.msra.mxu0 %v735
    %754 = vmatprep.subr.mxu0 0.0
    %755 = vmatpush1.msra.mxu0 %v736
    %756 = vmatprep.subr.mxu0 0.0
    %757 = vmatpush1.msra.mxu0 %v737
    %758 = vmatprep.subr.mxu0 0.0
    %759 = vmatpush1.msra.mxu0 %v738
    %760 = vmatprep.subr.mxu0 0.0
    %761 = vmatpush1.msra.mxu0 %v739
    %762 = vmatprep.subr.mxu0 0.0
    %763 = vmatpush1.msra.mxu0 %v740
    %764 = vmatprep.subr.mxu0 0.0
    %765 = vmatpush1.msra.mxu0 %v741
    %766 = vmatprep.subr.mxu0 0.0
    %767 = vmatpush1.msra.mxu0 %v742
    %768 = vmatprep.subr.mxu0 0.0
    %769 = vmatpush1.msra.mxu0 %v743
    %770 = vmatprep.subr.mxu0 0.0
    %771 = vmatpush1.msra.mxu0 %v744
    %772 = vmatprep.subr.mxu0 0.0
    %773 = vmatpush1.msra.mxu0 %v745
    %774 = vmatprep.subr.mxu0 0.0
    %775 = vmatpush1.msra.mxu0 %v746
    %776 = vmatprep.subr.mxu0 0.0
    %777 = vmatpush1.msra.mxu0 %v747
    %778 = vmatprep.subr.mxu0 0.0
    %779 = vmatpush1.msra.mxu0 %v748
    %780 = vmatprep.subr.mxu0 0.0
    %781 = vmatpush1.msra.mxu0 %v749
    %782 = vmatprep.subr.mxu0 0.0
    %783 = vmatpush1.msra.mxu0 0.0
    %784 = vmatprep.subr.mxu0 0.0
    %785 = vmatpush1.msra.mxu0 0.0
    %786 = vmatprep.subr.mxu0 0.0
    %787 = vmatpush1.msra.mxu0 0.0
    %788 = vmatprep.subr.mxu0 0.0
    %789 = vmatpush1.msra.mxu0 0.0
    %790 = vmatprep.subr.mxu0 0.0
    %791 = vmatpush1.msra.mxu0 0.0
    %792 = vmatprep.subr.mxu0 0.0
    %793 = vmatpush1.msra.mxu0 0.0
    %794 = vmatprep.subr.mxu0 0.0
    %795 = vmatpush1.msra.mxu0 0.0
    %796 = vmatprep.subr.mxu0 0.0
    %797 = vmatpush1.msra.mxu0 0.0
    %798 = vmatprep.subr.mxu0 0.0
    %799 = vmatpush1.msra.mxu0 0.0
    %800 = vmatprep.subr.mxu0 0.0
    %801 = vmatpush1.msra.mxu0 0.0
    %802 = vmatprep.subr.mxu0 0.0
    %803 = vmatpush1.msra.mxu0 0.0
    %804 = vmatprep.subr.mxu0 0.0
    %805 = vmatpush1.msra.mxu0 0.0
    %806 = vmatprep.subr.mxu0 0.0
    %807 = vmatpush1.msra.mxu0 0.0
    %808 = vmatprep.subr.mxu0 0.0
    %809 = vmatpush1.msra.mxu0 0.0
    %810 = vmatprep.subr.mxu0 0.0
    %811 = vmatpush1.msra.mxu0 0.0
    %812 = vmatprep.subr.mxu0 0.0
    %813 = vmatpush1.msra.mxu0 0.0
    %814 = vmatprep.mubr.f32.mxu0 0.0
    %815 = vmatmul.mubr.f32.gmra.mrb[0].mxu0 %v526
    %v816 = vpop.f32.mrb[0].mxu0
    %v817 = vadd.f32 0.0, %v816
    %v818 = vpop.f32.mrb[0].mxu0
    %819 = vmatprep.mubr.f32.mxu0 0.0
    %820 = vmatmul.mubr.f32.gmra.mrb[0].mxu0 %v527
    %v821 = vpop.f32.mrb[0].mxu0
    %v822 = vadd.f32 0.0, %v821
    %v823 = vpop.f32.mrb[0].mxu0
    %824 = vmatprep.mubr.f32.mxu0 0.0
    %825 = vmatmul.mubr.f32.gmra.mrb[0].mxu0 %v528
    %v826 = vpop.f32.mrb[0].mxu0
    %v827 = vadd.f32 0.0, %v826
    %v828 = vpop.f32.mrb[0].mxu0
    %829 = vmatprep.mubr.f32.mxu0 0.0
    %830 = vmatmul.mubr.f32.gmra.mrb[0].mxu0 %v529
    %v831 = vpop.f32.mrb[0].mxu0
    %v832 = vadd.f32 0.0, %v831
    %v833 = vpop.f32.mrb[0].mxu0
    %834 = vdwg.mxu0
    %v835 = vadd.f32 %v715, %v817
    %v836 = vadd.f32 %v720, %v822
    %v837 = vadd.f32 %v725, %v827
    %v838 = vadd.f32 %v730, %v832
    %v839 = vld [vmem:[%s4] sm:$0x1]
    %v841 = vlaneseq
    %v842 = vshrl.u32 %v841, 7
    %v843 = vsub.s32 0, %v842
    %v844 = vrot.slane %v839, %v843
    %v846 = vadd.f32 %v835, %v844
    %v847 = vadd.f32 %v836, %v844
    %v848 = vadd.f32 %v837, %v844
    %v849 = vadd.f32 %v838, %v844
    %v850 = vmax.f32 %v846, 0.0
    %v851 = vmax.f32 %v847, 0.0
    %v852 = vmax.f32 %v848, 0.0
    %v853 = vmax.f32 %v849, 0.0
    %854 = vst [vmem:[#allocation8] sm:$0xff] %v850
    %855 = vst [vmem:[#allocation8 + $0x8] sm:$0xff] %v851
    %856 = vst [vmem:[#allocation8 + $0x10] sm:$0xff] %v852
    %857 = vst [vmem:[#allocation8 + $0x18] sm:$0xff] %v853
    // Predicated region
    $region34: #{tpu_custom_call.1} parent=1 // pred_check
      _
    $region35: #{tpu_custom_call.1} parent=1 // pred_check_branch
      %859 = sbr.rel (0) target = $region37
    $region36: #{tpu_custom_call.1} parent=1 // pred_region
      %s861 = ssub.s32 512, 512
      %862 = vsyncadd [#allocation4], %s861
      %s863 = sshll.u32 [#allocation8], 4
      %s864 = int_to_ptr.vmem [resolvable:$true] %s863
      %869 = dma.vmem_to_hbm [thread:$0]  %s864, 512, %s5, [#allocation4], 128, 128, 8
    $region37: #{tpu_custom_call.1} parent=1 // pred_fallthru
      _
    // Predicated region
    $region38: #{tpu_custom_call.1} parent=1 // pred_check
      _
    $region39: #{tpu_custom_call.1} parent=1 // pred_check_branch
      %871 = sbr.rel (0) target = $region41
    $region40: #{tpu_custom_call.1} parent=1 // pred_region
      %872 = dma.done [#allocation4], 512
    $region41: #{tpu_custom_call.1} parent=1 // pred_fallthru
      _
    %873 = vsyncpa [#allocation3], 1
    %874 = vsyncpa [#allocation6], 1
    %875 = vsyncpa [#allocation4], 1

</llo_original>
